<compile_context>
chip_gen: v7x
topology: tpu7x:2x2x1
jax: 0.10.0
libtpu: 0.0.40
codegen_flags: <defaults>
</compile_context>

<pallas_src>
import math
from functools import partial

import jax
import jax.numpy as jnp
import numpy as np
from jax.experimental import pallas as pl
from jax.experimental.pallas import tpu as pltpu

# Rows (of 128 lanes) per grid step.  One step touches
#   2 arrays (1 in + 1 out) * 3 * block_rows * 128 * 4 B * 2 (double buffer)
# = ~6.3 MiB at 1024 rows -> fits v7x's 64 MiB VMEM (32 MiB scoped) and is
# large enough to amortize per-grid-step overhead on all generations.
_TARGET_BLOCK_ROWS = 1024


# ----------------------------- Pallas kernel ------------------------------ #
def _affine_kernel(rot_ref, trans_ref, v_ref, out_ref):
    """out = R' @ v + t   (single output; sign flip handled by the consumer).

    v_ref / out_ref : (3, block_rows, 128) f32 VMEM tiles (sublane/lane dense).
    rot_ref  : (3, 3) f32 SMEM  (per-axis scale already folded in).
    trans_ref: (3,)   f32 SMEM  (100 * offsets).
    """
    vx = v_ref[0]            # (block_rows, 128) dense slabs
    vy = v_ref[1]
    vz = v_ref[2]

    # scalar-broadcast rotation on the VPU (no MXU involvement)
    out_ref[0] = rot_ref[0, 0] * vx + rot_ref[0, 1] * vy + rot_ref[0, 2] * vz + trans_ref[0]
    out_ref[1] = rot_ref[1, 0] * vx + rot_ref[1, 1] * vy + rot_ref[1, 2] * vz + trans_ref[1]
    out_ref[2] = rot_ref[2, 0] * vx + rot_ref[2, 1] * vy + rot_ref[2, 2] * vz + trans_ref[2]


def _transform_verts(verts_blocked, rot_scaled, trans, block_rows):
    """verts_blocked: (3, M, 128) f32; rot_scaled: (3,3) f32; trans: (3,) f32."""
    _, m, _ = verts_blocked.shape
    grid = (m // block_rows,)
    blk = pl.BlockSpec((3, block_rows, 128), lambda i: (0, i, 0))
    big_bytes = 3 * m * 128 * 4                          # one (3, M, 128) f32 array
    cost = pl.CostEstimate(
        flops=18 * m * 128,                              # 9 mul + 9 add per vertex
        transcendentals=0,
        bytes_accessed=2 * big_bytes + (9 + 3) * 4,      # 1 read + 1 write + scalars
    )
    return pl.pallas_call(
        _affine_kernel,
        out_shape=jax.ShapeDtypeStruct((3, m, 128), jnp.float32),
        grid=grid,
        in_specs=[
            pl.BlockSpec(memory_space=pltpu.MemorySpace.SMEM),   # rot (scaled)
            pl.BlockSpec(memory_space=pltpu.MemorySpace.SMEM),   # translation
            blk,                                                 # verts tiles
        ],
        out_specs=blk,
        compiler_params=pltpu.CompilerParams(
            dimension_semantics=("parallel",),        # shard across TCs on v7x
            vmem_limit_bytes=32 * 1024 * 1024,        # > double-buffered footprint
        ),
        cost_estimate=cost,
    )(rot_scaled, trans, verts_blocked)


# --------------------- jitted forward-path JAX glue ------------------------ #
@partial(jax.jit, static_argnums=(0, 1))
def _forward_jit(block_rows, n_verts, verts_blocked, extent, obj_size, offsets, rotmat):
    """Fold scale into R, run the Pallas kernel, extract fused (N,3) views."""
    scale = obj_size / extent
    rot_scaled = rotmat * scale[None, :]                 # R' = R @ diag(size/extent)
    trans = 100.0 * offsets

    out_blk = _transform_verts(verts_blocked, rot_scaled, trans, block_rows)

    # Single blocked->(N,3) relayout; the y/z negation fuses into it under jit.
    out_n3 = out_blk.reshape(3, -1)[:, :n_verts].T                       # (N, 3)
    flip_n3 = out_n3 * jnp.asarray([1.0, -1.0, -1.0], jnp.float32)       # render-space
    return out_blk, out_n3, flip_n3


# ------------------------- plain-python euler glue ------------------------- #
def _euler_angles_to_matrix_xyz(pitch, yaw, roll):
    """pytorch3d euler_angles_to_matrix([pitch, yaw, roll], ['X','Y','Z'])."""
    cx, sx = math.cos(pitch), math.sin(pitch)
    cy, sy = math.cos(yaw), math.sin(yaw)
    cz, sz = math.cos(roll), math.sin(roll)
    rx = np.array([[1, 0, 0], [0, cx, -sx], [0, sx, cx]], dtype=np.float32)
    ry = np.array([[cy, 0, sy], [0, 1, 0], [-sy, 0, cy]], dtype=np.float32)
    rz = np.array([[cz, -sz, 0], [sz, cz, 0], [0, 0, 1]], dtype=np.float32)
    return rx @ ry @ rz


def _matrix_to_euler_angles_xyz(m):
    """pytorch3d matrix_to_euler_angles(m, ['X','Y','Z']) -> (alpha, beta, gamma)."""
    alpha = math.atan2(-m[1, 2], m[2, 2])
    beta = math.asin(max(-1.0, min(1.0, float(m[0, 2]))))
    gamma = math.atan2(-m[0, 1], m[0, 0])
    return alpha, beta, gamma


def _choose_blocking(m0):
    """Pick (block_rows, padded_m) given m0 = ceil(N/128) rows of 128 lanes."""
    if m0 < 16:
        # Too small to split into two (8,128)-aligned blocks: one block.
        block_rows = -(-m0 // 8) * 8
        return block_rows, block_rows
    # At least 2 blocks (so both v7x TCs get work), capped at the target size.
    nblocks = max(2, -(-m0 // _TARGET_BLOCK_ROWS))
    block_rows = -(-(-(-m0 // nblocks)) // 8) * 8        # ceil(m0/nblocks) -> mult of 8
    m = -(-m0 // block_rows) * block_rows
    return block_rows, m


# --------------------------------- module ---------------------------------- #
class JOHMRLitePallas:
    """JAX/Pallas version of JOHMRLite. Rendering step is not reproduced."""

    def __init__(self, obj_verts, obj_faces, img_h, img_w):
        obj_verts = jnp.asarray(obj_verts, jnp.float32)          # (N, 3)
        self.obj_faces = jnp.asarray(obj_faces, jnp.int32)       # (F, 3), renderer-only
        self.img_h = img_h
        self.img_w = img_w
        self.n_verts = int(obj_verts.shape[0])

        # The mesh is fixed: compute the per-axis extent ONCE here so the
        # kernel never does a cross-lane reduction (and padding below cannot
        # corrupt it).  Guard flat meshes (extent == 0) against divide-by-zero.
        extent = jnp.max(obj_verts, axis=0) - jnp.min(obj_verts, axis=0)
        self._extent = jnp.where(extent == 0.0, 1.0, extent)

        # Cache the kernel-side sublane/lane-dense (3, M, 128) layout once
        # (one-time transpose; no per-forward() transposes of the big array).
        n = self.n_verts
        m0 = max(1, -(-n // 128))                                # ceil(N / 128)
        block_rows, m = _choose_blocking(m0)
        n_pad = m * 128
        padded = jnp.zeros((n_pad, 3), jnp.float32).at[:n].set(obj_verts)
        self._verts_blocked = jnp.transpose(padded).reshape(3, m, 128)
        self._block_rows = block_rows
        self._m = m

    def forward(self, obj_size, x_offset, y_offset, z_offset, yaw, pitch, roll):
        rotmat_np = _euler_angles_to_matrix_xyz(pitch, yaw, roll)   # (3, 3) numpy
        rot_alpha, rot_beta, rot_gamma = _matrix_to_euler_angles_xyz(rotmat_np)

        obj_size = jnp.asarray(obj_size, jnp.float32)
        offsets = jnp.asarray([x_offset, y_offset, z_offset], jnp.float32)
        rotmat = jnp.asarray(rotmat_np, jnp.float32)

        out_blk, out_n3, flip_n3 = _forward_jit(
            self._block_rows, self.n_verts,
            self._verts_blocked, self._extent, obj_size, offsets, rotmat)

        # Blocked layout kept around for consumers that can use it directly
        # (no extra HBM pass).  NOTE: padded rows (vertex slots >= N) contain
        # the translation vector (R'·0 + t), not zeros — mask/ignore them.
        self.obj_verts_output_blocked = out_blk                  # (3, M, 128)
        self.obj_verts_output = out_n3                           # (N, 3)

        # TODO(synk): pytorch3d Meshes/TexturesVertex/vis_render rasterization
        #             intentionally omitted; return render-space vertices.
        return flip_n3, rot_alpha, rot_beta, rot_gamma


# ------------------------------ reference ---------------------------------- #
def _reference(verts, size, off, rotmat):
    diff = verts.max(axis=0) - verts.min(axis=0)
    v = verts * (size / diff)
    v = (rotmat @ v.T).T + 100.0 * off
    flip = v * jnp.asarray([1.0, -1.0, -1.0], jnp.float32)
    return v, flip


def _run_case(n_verts, n_faces, seed):
    key = jax.random.PRNGKey(seed)
    obj_verts = jax.random.normal(key, (n_verts, 3), dtype=jnp.float32)
    obj_faces = jax.random.randint(jax.random.PRNGKey(seed + 1), (n_faces, 3),
                                   0, n_verts, dtype=jnp.int32)

    model = JOHMRLitePallas(obj_verts, obj_faces, img_h=16, img_w=16)

    obj_size = [0.3, 0.5, 0.4]
    x_off, y_off, z_off = 0.01, -0.02, 0.03
    yaw, pitch, roll = 0.3, 0.2, -0.1

    render_verts, ra, rb, rg = model.forward(obj_size, x_off, y_off, z_off,
                                             yaw, pitch, roll)
    render_verts = jax.block_until_ready(render_verts)
    out_verts = jax.block_until_ready(model.obj_verts_output)

    # sanity-check against a plain-JAX reference
    rotmat = jnp.asarray(_euler_angles_to_matrix_xyz(pitch, yaw, roll))
    size = jnp.asarray(obj_size, jnp.float32)
    off = jnp.asarray([x_off, y_off, z_off], jnp.float32)
    ref_out, ref_flip = _reference(obj_verts, size, off, rotmat)
    assert jnp.allclose(out_verts, ref_out, atol=1e-4, rtol=1e-4)
    assert jnp.allclose(render_verts, ref_flip, atol=1e-4, rtol=1e-4)
    assert abs(ra - pitch) < 1e-5 and abs(rb - yaw) < 1e-5 and abs(rg - roll) < 1e-5


if __name__ == "__main__":
    # Small mesh: exercises the lane-padding / single-block path.
    _run_case(n_verts=200, n_faces=64, seed=0)
    # Medium mesh: exercises the multi-block (grid >= 2) pipelined path.
    _run_case(n_verts=5000, n_faces=256, seed=2)
    print("KERNEL_OK")
</pallas_src>

<mosaic_0001>
module attributes {stable_mosaic.version = 11 : i64} {
  func.func @_affine_kernel(%arg0: i32, %arg1: memref<3x3xf32, #tpu.memory_space<smem>>, %arg2: memref<3xf32, #tpu.memory_space<smem>>, %arg3: memref<3x8x128xf32, #tpu.memory_space<vmem>>, %arg4: memref<3x8x128xf32, #tpu.memory_space<vmem>>) attributes {dimension_semantics = [#tpu.dimension_semantics<parallel>], iteration_bounds = array<i64: 1>, scalar_prefetch = 0 : i64, scratch_operands = 0 : i64, tpu.core_type = #tpu.core_type<tc>, window_params = [{transform_indices = @transform_0, window_bounds = array<i64: 3, 3>}, {transform_indices = @transform_1, window_bounds = array<i64: 3>}, {transform_indices = @transform_2, window_bounds = array<i64: 3, 8, 128>}, {transform_indices = @transform_3, window_bounds = array<i64: 3, 8, 128>}]} {
    %c0 = arith.constant 0 : index
    %c0_0 = arith.constant 0 : index
    %c0_1 = arith.constant 0 : index
    %0 = vector.load %arg3[%c0, %c0_0, %c0_1] : memref<3x8x128xf32, #tpu.memory_space<vmem>>, vector<1x8x128xf32>
    %1 = vector.shape_cast %0 : vector<1x8x128xf32> to vector<8x128xf32>
    %c1 = arith.constant 1 : index
    %c0_2 = arith.constant 0 : index
    %c0_3 = arith.constant 0 : index
    %2 = vector.load %arg3[%c1, %c0_2, %c0_3] : memref<3x8x128xf32, #tpu.memory_space<vmem>>, vector<1x8x128xf32>
    %3 = vector.shape_cast %2 : vector<1x8x128xf32> to vector<8x128xf32>
    %c2 = arith.constant 2 : index
    %c0_4 = arith.constant 0 : index
    %c0_5 = arith.constant 0 : index
    %4 = vector.load %arg3[%c2, %c0_4, %c0_5] : memref<3x8x128xf32, #tpu.memory_space<vmem>>, vector<1x8x128xf32>
    %5 = vector.shape_cast %4 : vector<1x8x128xf32> to vector<8x128xf32>
    %c0_6 = arith.constant 0 : index
    %c0_7 = arith.constant 0 : index
    %6 = memref.load %arg1[%c0_6, %c0_7] : memref<3x3xf32, #tpu.memory_space<smem>>
    %7 = vector.broadcast %6 : f32 to vector<8x128xf32>
    %8 = arith.mulf %7, %1 : vector<8x128xf32>
    %c0_8 = arith.constant 0 : index
    %c1_9 = arith.constant 1 : index
    %9 = memref.load %arg1[%c0_8, %c1_9] : memref<3x3xf32, #tpu.memory_space<smem>>
    %10 = vector.broadcast %9 : f32 to vector<8x128xf32>
    %11 = arith.mulf %10, %3 : vector<8x128xf32>
    %12 = arith.addf %8, %11 : vector<8x128xf32>
    %c0_10 = arith.constant 0 : index
    %c2_11 = arith.constant 2 : index
    %13 = memref.load %arg1[%c0_10, %c2_11] : memref<3x3xf32, #tpu.memory_space<smem>>
    %14 = vector.broadcast %13 : f32 to vector<8x128xf32>
    %15 = arith.mulf %14, %5 : vector<8x128xf32>
    %16 = arith.addf %12, %15 : vector<8x128xf32>
    %c0_12 = arith.constant 0 : index
    %17 = memref.load %arg2[%c0_12] : memref<3xf32, #tpu.memory_space<smem>>
    %18 = vector.broadcast %17 : f32 to vector<8x128xf32>
    %19 = arith.addf %16, %18 : vector<8x128xf32>
    %c0_13 = arith.constant 0 : index
    %c0_14 = arith.constant 0 : index
    %c0_15 = arith.constant 0 : index
    %20 = vector.load %arg4[%c0_13, %c0_14, %c0_15] : memref<3x8x128xf32, #tpu.memory_space<vmem>>, vector<1x8x128xf32>
    %21 = vector.shape_cast %20 : vector<1x8x128xf32> to vector<8x128xf32>
    %22 = vector.shape_cast %19 : vector<8x128xf32> to vector<1x8x128xf32>
    tpu.vector_store %arg4[%c0_13, %c0_14, %c0_15], %22 {strides = array<i32>} : memref<3x8x128xf32, #tpu.memory_space<vmem>>, vector<1x8x128xf32>,
    %c1_16 = arith.constant 1 : index
    %c0_17 = arith.constant 0 : index
    %23 = memref.load %arg1[%c1_16, %c0_17] : memref<3x3xf32, #tpu.memory_space<smem>>
    %24 = vector.broadcast %23 : f32 to vector<8x128xf32>
    %25 = arith.mulf %24, %1 : vector<8x128xf32>
    %c1_18 = arith.constant 1 : index
    %c1_19 = arith.constant 1 : index
    %26 = memref.load %arg1[%c1_18, %c1_19] : memref<3x3xf32, #tpu.memory_space<smem>>
    %27 = vector.broadcast %26 : f32 to vector<8x128xf32>
    %28 = arith.mulf %27, %3 : vector<8x128xf32>
    %29 = arith.addf %25, %28 : vector<8x128xf32>
    %c1_20 = arith.constant 1 : index
    %c2_21 = arith.constant 2 : index
    %30 = memref.load %arg1[%c1_20, %c2_21] : memref<3x3xf32, #tpu.memory_space<smem>>
    %31 = vector.broadcast %30 : f32 to vector<8x128xf32>
    %32 = arith.mulf %31, %5 : vector<8x128xf32>
    %33 = arith.addf %29, %32 : vector<8x128xf32>
    %c1_22 = arith.constant 1 : index
    %34 = memref.load %arg2[%c1_22] : memref<3xf32, #tpu.memory_space<smem>>
    %35 = vector.broadcast %34 : f32 to vector<8x128xf32>
    %36 = arith.addf %33, %35 : vector<8x128xf32>
    %c1_23 = arith.constant 1 : index
    %c0_24 = arith.constant 0 : index
    %c0_25 = arith.constant 0 : index
    %37 = vector.load %arg4[%c1_23, %c0_24, %c0_25] : memref<3x8x128xf32, #tpu.memory_space<vmem>>, vector<1x8x128xf32>
    %38 = vector.shape_cast %37 : vector<1x8x128xf32> to vector<8x128xf32>
    %39 = vector.shape_cast %36 : vector<8x128xf32> to vector<1x8x128xf32>
    tpu.vector_store %arg4[%c1_23, %c0_24, %c0_25], %39 {strides = array<i32>} : memref<3x8x128xf32, #tpu.memory_space<vmem>>, vector<1x8x128xf32>,
    %c2_26 = arith.constant 2 : index
    %c0_27 = arith.constant 0 : index
    %40 = memref.load %arg1[%c2_26, %c0_27] : memref<3x3xf32, #tpu.memory_space<smem>>
    %41 = vector.broadcast %40 : f32 to vector<8x128xf32>
    %42 = arith.mulf %41, %1 : vector<8x128xf32>
    %c2_28 = arith.constant 2 : index
    %c1_29 = arith.constant 1 : index
    %43 = memref.load %arg1[%c2_28, %c1_29] : memref<3x3xf32, #tpu.memory_space<smem>>
    %44 = vector.broadcast %43 : f32 to vector<8x128xf32>
    %45 = arith.mulf %44, %3 : vector<8x128xf32>
    %46 = arith.addf %42, %45 : vector<8x128xf32>
    %c2_30 = arith.constant 2 : index
    %c2_31 = arith.constant 2 : index
    %47 = memref.load %arg1[%c2_30, %c2_31] : memref<3x3xf32, #tpu.memory_space<smem>>
    %48 = vector.broadcast %47 : f32 to vector<8x128xf32>
    %49 = arith.mulf %48, %5 : vector<8x128xf32>
    %50 = arith.addf %46, %49 : vector<8x128xf32>
    %c2_32 = arith.constant 2 : index
    %51 = memref.load %arg2[%c2_32] : memref<3xf32, #tpu.memory_space<smem>>
    %52 = vector.broadcast %51 : f32 to vector<8x128xf32>
    %53 = arith.addf %50, %52 : vector<8x128xf32>
    %c2_33 = arith.constant 2 : index
    %c0_34 = arith.constant 0 : index
    %c0_35 = arith.constant 0 : index
    %54 = vector.load %arg4[%c2_33, %c0_34, %c0_35] : memref<3x8x128xf32, #tpu.memory_space<vmem>>, vector<1x8x128xf32>
    %55 = vector.shape_cast %54 : vector<1x8x128xf32> to vector<8x128xf32>
    %56 = vector.shape_cast %53 : vector<8x128xf32> to vector<1x8x128xf32>
    tpu.vector_store %arg4[%c2_33, %c0_34, %c0_35], %56 {strides = array<i32>} : memref<3x8x128xf32, #tpu.memory_space<vmem>>, vector<1x8x128xf32>,
    return
  }
  func.func @transform_0(%arg0: i32) -> (i32, i32) {
    %c0_i32 = arith.constant 0 : i32
    %c0_i32_0 = arith.constant 0 : i32
    %c0_i32_1 = arith.constant 0 : i32
    return %c0_i32, %c0_i32_0 : i32, i32
  }
  func.func @transform_1(%arg0: i32) -> i32 {
    %c0_i32 = arith.constant 0 : i32
    %c0_i32_0 = arith.constant 0 : i32
    return %c0_i32 : i32
  }
  func.func @transform_2(%arg0: i32) -> (i32, i32, i32) {
    %c0_i32 = arith.constant 0 : i32
    %c0_i32_0 = arith.constant 0 : i32
    %c0_i32_1 = arith.constant 0 : i32
    return %c0_i32, %arg0, %c0_i32_0 : i32, i32, i32
  }
  func.func @transform_3(%arg0: i32) -> (i32, i32, i32) {
    %c0_i32 = arith.constant 0 : i32
    %c0_i32_0 = arith.constant 0 : i32
    %c0_i32_1 = arith.constant 0 : i32
    return %c0_i32, %arg0, %c0_i32_0 : i32, i32, i32
  }
}

</mosaic_0001>

<llo_original>
// kernel: div.1
$region0: #{div.1}
  #allocation0 [shape = 's32[1]{0}', space=sflag, size = 0x4, scoped, tag = 'scoped memory for div.1']
  %s0 = inlined_call_operand.vmem [shape: f32[3], index: 0, kind: input, shape index: {}]
  %s1 = inlined_call_operand.vmem [shape: f32[3], index: 1, kind: input, shape index: {}]
  %s2 = inlined_call_operand.vmem [shape: f32[3], index: 2, kind: output, shape index: {}]
  %v3 = vld [vmem:[%s0] sm:$0x1]
  %v4 = vld [vmem:[%s1] sm:$0x1]
  %5 = xla_tuple %v3, %v4
  %6 = xla_tuple %5
  %v7 = vrcp.pop %v4
  %v8 = vmul.f32 %v3, %v7
  %9 = xla_tuple %v8
  %10 = vst [vmem:[%s2] sm:$0x1] %v8

// kernel: _forward_jit.1
$region0: #{_forward_jit.1}
  #allocation0 [shape = 'u32[]', space=smem, size = 0x4, offset = 0x4, fixed_abs, tag = 'smem constant byte address 0x4 - core index']
  #allocation1 [shape = 'u32[144,128]{1,0:T(1,128)}', space=vmem, size = 0x12000, scoped, tag = 'internal scratch']
  %s0 = inlined_call_operand.vmem [shape: f32[3,3], index: 0, kind: input, shape index: {}]
  %s1 = inlined_call_operand.vmem [shape: f32[3], index: 1, kind: input, shape index: {}]
  %s2 = inlined_call_operand.hbm [shape: f32[3,8,128], index: 2, kind: input, shape index: {}]
  %s3 = inlined_call_operand.vmem [shape: f32[3,8,128], index: 3, kind: output, shape index: {}]
  %s4 = sld [smem:[#allocation0]]
  $region34: #{_forward_jit.1} parent=0
    _
  %s6 = ssub.s32 1, %s4
  %s7 = scalar_select 0, %s6, %s4
  $region1: #{_forward_jit.1} parent=0
    #allocation2 [shape = 'u8[2048]{0}', space=smem, size = 0x800, scoped, tag = 'input window, operand 0, single buffered']
    #allocation3 [shape = 's32[1]{0}', space=sflag, size = 0x4, scoped, tag = 'scoped memory for _forward_jit.1']
    #allocation4 [shape = 's32[1]{0}', space=sflag, size = 0x4, scoped, tag = 'scoped memory for _forward_jit.1']
    #allocation5 [shape = 'u8[512]{0}', space=smem, size = 0x200, scoped, tag = 'input window, operand 1, single buffered']
    #allocation6 [shape = 's32[1]{0}', space=sflag, size = 0x4, scoped, tag = 'scoped memory for _forward_jit.1']
    #allocation7 [shape = 'u8[12288]{0}', space=vmem, size = 0x3000, scoped, tag = 'input window, operand 2, single buffered']
    %8 = vsyncpa [#allocation4], 0
    %9 = vsyncpa [#allocation6], 0
    %10 = vsyncpa [#allocation3], 0
    // Predicated region
    $region2: #{_forward_jit.1} parent=1 // pred_check
      _
    $region3: #{_forward_jit.1} parent=1 // pred_check_branch
      %12 = sbr.rel (0) target = $region5
    $region4: #{_forward_jit.1} parent=1 // pred_region
      %s14 = ssub.s32 64, 64
      %15 = vsyncadd [#allocation4], %s14
      %s17 = sshll.u32 %s0, 4
      %s18 = int_to_ptr.vmem [resolvable:$true] %s17
      %20 = dma.vmem_to_smem %s18, 64, [#allocation2], [#allocation4]
    $region5: #{_forward_jit.1} parent=1 // pred_fallthru
      _
    // Predicated region
    $region6: #{_forward_jit.1} parent=1 // pred_check
      _
    $region7: #{_forward_jit.1} parent=1 // pred_check_branch
      %22 = sbr.rel (0) target = $region9
    $region8: #{_forward_jit.1} parent=1 // pred_region
      %s24 = ssub.s32 16, 16
      %25 = vsyncadd [#allocation6], %s24
      %s27 = sshll.u32 %s1, 4
      %s28 = int_to_ptr.vmem [resolvable:$true] %s27
      %30 = dma.vmem_to_smem %s28, 16, [#allocation5], [#allocation6]
    $region9: #{_forward_jit.1} parent=1 // pred_fallthru
      _
    // Predicated region
    $region10: #{_forward_jit.1} parent=1 // pred_check
      _
    $region11: #{_forward_jit.1} parent=1 // pred_check_branch
      %32 = sbr.rel (0) target = $region13
    $region12: #{_forward_jit.1} parent=1 // pred_region
      %s34 = ssub.s32 384, 384
      %35 = vsyncadd [#allocation3], %s34
      %s36 = sshll.u32 [#allocation7], 4
      %s37 = int_to_ptr.vmem [resolvable:$true] %s36
      %42 = dma.hbm_to_vmem [thread:$0]  %s2, 384, %s37, [#allocation3], 128, 128, 8
    $region13: #{_forward_jit.1} parent=1 // pred_fallthru
      _
    // Predicated region
    $region14: #{_forward_jit.1} parent=1 // pred_check
      _
    $region15: #{_forward_jit.1} parent=1 // pred_check_branch
      %44 = sbr.rel (0) target = $region17
    $region16: #{_forward_jit.1} parent=1 // pred_region
      %45 = dma.done [#allocation4], 64
    $region17: #{_forward_jit.1} parent=1 // pred_fallthru
      _
    // Predicated region
    $region18: #{_forward_jit.1} parent=1 // pred_check
      _
    $region19: #{_forward_jit.1} parent=1 // pred_check_branch
      %47 = sbr.rel (0) target = $region21
    $region20: #{_forward_jit.1} parent=1 // pred_region
      %48 = dma.done [#allocation6], 16
    $region21: #{_forward_jit.1} parent=1 // pred_fallthru
      _
    // Predicated region
    $region22: #{_forward_jit.1} parent=1 // pred_check
      _
    $region23: #{_forward_jit.1} parent=1 // pred_check_branch
      %50 = sbr.rel (0) target = $region25
    $region24: #{_forward_jit.1} parent=1 // pred_region
      %51 = dma.done [#allocation3], 384
    $region25: #{_forward_jit.1} parent=1 // pred_fallthru
      _
    %52 = sfence
    %v53 = vld [vmem:[#allocation7] sm:$0xff]
    %s54 = scalar_lea.vmem [#allocation7], 8
    %v55 = vld [vmem:[%s54] sm:$0xff]
    %s56 = scalar_lea.vmem [#allocation7], 16
    %v57 = vld [vmem:[%s56] sm:$0xff]
    %s58 = sld [smem:[#allocation2]]
    %v59 = vstv %s58
    %v60 = vmul.f32 %v59, %v53
    %s61 = sld [smem:[#allocation2 + $0x1]]
    %v62 = vstv %s61
    %v63 = vmul.f32 %v62, %v55
    %v64 = vadd.f32 %v60, %v63
    %s65 = sld [smem:[#allocation2 + $0x2]]
    %v66 = vstv %s65
    %v67 = vmul.f32 %v66, %v57
    %v68 = vadd.f32 %v64, %v67
    %s69 = sld [smem:[#allocation5]]
    %v70 = vstv %s69
    %v71 = vadd.f32 %v68, %v70
    %72 = vst [vmem:[%s3] sm:$0xff] %v71
    %s73 = sld [smem:[#allocation2 + $0x80]]
    %v74 = vstv %s73
    %v75 = vmul.f32 %v74, %v53
    %s76 = sld [smem:[#allocation2 + $0x81]]
    %v77 = vstv %s76
    %v78 = vmul.f32 %v77, %v55
    %v79 = vadd.f32 %v75, %v78
    %s80 = sld [smem:[#allocation2 + $0x82]]
    %v81 = vstv %s80
    %v82 = vmul.f32 %v81, %v57
    %v83 = vadd.f32 %v79, %v82
    %s84 = sld [smem:[#allocation5 + $0x1]]
    %v85 = vstv %s84
    %v86 = vadd.f32 %v83, %v85
    %s87 = scalar_lea.vmem %s3, 8
    %88 = vst [vmem:[%s87] sm:$0xff] %v86
    %s89 = sld [smem:[#allocation2 + $0x100]]
    %v90 = vstv %s89
    %v91 = vmul.f32 %v90, %v53
    %s92 = sld [smem:[#allocation2 + $0x101]]
    %v93 = vstv %s92
    %v94 = vmul.f32 %v93, %v55
    %v95 = vadd.f32 %v91, %v94
    %s96 = sld [smem:[#allocation2 + $0x102]]
    %v97 = vstv %s96
    %v98 = vmul.f32 %v97, %v57
    %v99 = vadd.f32 %v95, %v98
    %s100 = sld [smem:[#allocation5 + $0x2]]
    %v101 = vstv %s100
    %v102 = vadd.f32 %v99, %v101
    %s103 = scalar_lea.vmem %s3, 16
    %104 = vst [vmem:[%s103] sm:$0xff] %v102
    // Predicated region
    $region26: #{_forward_jit.1} parent=1 // pred_check
      _
    $region27: #{_forward_jit.1} parent=1 // pred_check_branch
      %106 = sbr.rel (0) target = $region29
    $region28: #{_forward_jit.1} parent=1 // pred_region
      _
    $region29: #{_forward_jit.1} parent=1 // pred_fallthru
      _
    // Predicated region
    $region30: #{_forward_jit.1} parent=1 // pred_check
      _
    $region31: #{_forward_jit.1} parent=1 // pred_check_branch
      %108 = sbr.rel (0) target = $region33
    $region32: #{_forward_jit.1} parent=1 // pred_region
      _
    $region33: #{_forward_jit.1} parent=1 // pred_fallthru
      _
    %109 = vsyncpa [#allocation3], 1
    %110 = vsyncpa [#allocation4], 1
    %111 = vsyncpa [#allocation6], 1

</llo_original>
